<compile_context>
chip_gen: v7x
topology: tpu7x:2x2x1
jax: 0.10.0
libtpu: 0.0.40
codegen_flags: <defaults>
</compile_context>

<pallas_src>
import functools

import jax
import jax.numpy as jnp
import numpy as np
from jax.experimental import pallas as pl
from jax.experimental.pallas import tpu as pltpu

LRELU_SLOPE = 0.1
_ROW_TARGET = 2048          # target flattened rows (M) per kernel invocation
_ROW_ALIGN = 16             # sublane alignment for bf16/f32 row blocks


def get_padding(kernel_size, dilation=1):
    return int((kernel_size * dilation - dilation) / 2)


def _round_up(x, m):
    return ((x + m - 1) // m) * m


# -----------------------------------------------------------------------------
# Chip-adaptive budgets: scoped VMEM limit + Cout tile cap.
# -----------------------------------------------------------------------------
_BUDGET = None


def _tpu_budget():
    global _BUDGET
    if _BUDGET is None:
        cap = 64 * 1024 * 1024                       # conservative default (v7x-sized)
        try:
            info_cap = int(pltpu.get_tpu_info().vmem_capacity_bytes)
            if info_cap >= 32 * 1024 * 1024:
                cap = info_cap
        except Exception:
            pass
        vmem_limit = int(cap * 3 // 4)               # 96 MiB on v5e/v6e, 48 MiB on v7x
        tn_cap = 1024 if cap >= 100 * 1024 * 1024 else 512
        _BUDGET = (vmem_limit, tn_cap)
    return _BUDGET


# -----------------------------------------------------------------------------
# pltpu.roll convention probe.  We need shifted[i] = y[i + k]; under the numpy
# convention roll(y, s)[i] = y[i - s] so s = -k.  A one-off tiny kernel pins the
# convention so the tap realignment can never be silently flipped.
# -----------------------------------------------------------------------------
_ROLL_NP = None


def _roll_is_np_convention():
    global _ROLL_NP
    if _ROLL_NP is None:
        def k(x_ref, o_ref):
            o_ref[...] = pltpu.roll(x_ref[...], 1, 0)
        x = jnp.arange(16 * 128, dtype=jnp.float32).reshape(16, 128)
        y = pl.pallas_call(k, out_shape=jax.ShapeDtypeStruct((16, 128), jnp.float32))(x)
        _ROLL_NP = bool(np.asarray(y)[1, 0] == 0.0)  # np.roll(x,1,0)[1,0] == x[0,0] == 0
    return _ROLL_NP


# -----------------------------------------------------------------------------
# Pallas kernel: one conv-layer tile.
#   x_ref: (n_blk*Hq, Cg)     flattened row block, Cg = stride*Cin (stride folded)
#   w_ref: (Kp, Cg, tn)       folded weight taps, tn = Cout tile
#   b_ref: (1, tn)            f32 bias tile
#   o_ref: (n_blk*L_out, tn)  output, H already zero-padded for the NEXT layer:
#                             per row n the data lives at rows [pad_lo, pad_lo+h_out).
# One big MXU matmul per tap over the whole flattened block; taps realigned with
# pltpu.roll (the -pad_lo pre-shift keeps the final store sublane-aligned with its
# source); single f32 accumulator; bias/LeakyReLU applied once; zero strips stored so
# the consumer only needs a free reshape.
# -----------------------------------------------------------------------------
def _conv_kernel(x_ref, w_ref, b_ref, o_ref, *, k_taps, hq, h_out, l_out, pad_lo,
                 n_blk, apply_lrelu, np_roll):
    m = n_blk * hq
    x = x_ref[...]                                              # (m, Cg)
    acc = None
    for d in range(k_taps):
        y = jnp.dot(x, w_ref[d], preferred_element_type=jnp.float32)   # (m, tn)
        off = d - pad_lo                   # want shifted[i] = y[i + off]
        if off % m != 0:
            shift = (-off) % m if np_roll else off % m
            y = pltpu.roll(y, shift, 0)    # wrap rows never land in rows we read
        acc = y if acc is None else acc + y
    acc = acc + b_ref[...]                                      # (1, tn) broadcast once
    if apply_lrelu:
        acc = jnp.where(acc >= 0.0, acc, LRELU_SLOPE * acc)
    acc = acc.astype(o_ref.dtype)

    tn = o_ref.shape[-1]
    tail = l_out - pad_lo - h_out
    z_lo = jnp.zeros((pad_lo, tn), o_ref.dtype) if pad_lo else None
    z_hi = jnp.zeros((tail, tn), o_ref.dtype) if tail else None
    for n in range(n_blk):                 # stores only; no matmuls / live accumulators
        o = n * l_out
        a = n * hq
        o_ref[o + pad_lo:o + pad_lo + h_out, :] = acc[a + pad_lo:a + pad_lo + h_out, :]
        if pad_lo:
            o_ref[o:o + pad_lo, :] = z_lo
        if tail:
            o_ref[o + pad_lo + h_out:o + l_out, :] = z_hi


# -----------------------------------------------------------------------------
# Tiling choice: n_blk = divisor of the padded row count targeting ~2048 rows per
# block; tn capped per chip; both shrunk if the VMEM estimate exceeds the budget.
# -----------------------------------------------------------------------------
def _pick_tiles(n_total, hq, cg, kp, cout_p, l_out, in_isz, out_isz, tn_cap, budget):
    divisors = [d for d in range(1, n_total + 1) if n_total % d == 0]
    tn = min(cout_p, tn_cap)
    cand = [d for d in divisors if d * hq <= _ROW_TARGET]
    n_blk = max(cand) if cand else 1
    # keep >=2 row tiles when blocks are already comfortably large (megacore sharding)
    if (n_blk == n_total and n_total % 2 == 0
            and (n_total // 2) * hq >= _ROW_TARGET // 2):
        n_blk = n_total // 2

    def est(nb, t):
        x_t = nb * hq * cg * in_isz
        w_t = kp * cg * t * in_isz
        o_t = nb * l_out * t * out_isz
        acc = nb * hq * t * 4
        return 2 * (x_t + w_t + o_t + t * 4) + 2 * acc

    while est(n_blk, tn) > budget:
        smaller = [d for d in divisors if d < n_blk]
        if smaller:
            n_blk = max(smaller)
        elif tn > 128 and cout_p % (tn // 2) == 0:
            tn //= 2
        else:
            break
    return n_blk, tn


def conv_layer(x2d, layer, geom, n_rows):
    """x2d: (n_rows*Hq, Cg) activation (stride folded, H pre-padded) in the layer's
    compute dtype.  Returns (n_rows*L_out, Cout_p) with H already padded for the next
    layer (zeros outside [pad_lo, pad_lo + h_out))."""
    hq, h_out, l_out, pad_lo = geom['hq'], geom['h_out'], geom['l_out'], geom['pad_lo']
    out_dt = geom['out_dt']
    kp, cg, cout_p = layer['kp'], layer['cg'], layer['cout_p']
    vmem_limit, tn_cap = _tpu_budget()
    in_isz = jnp.dtype(layer['cdt']).itemsize
    out_isz = jnp.dtype(out_dt).itemsize
    n_blk, tn = _pick_tiles(n_rows, hq, cg, kp, cout_p, l_out, in_isz, out_isz,
                            tn_cap, int(vmem_limit * 0.85))
    grid = (cout_p // tn, n_rows // n_blk)        # weight tile outer, row blocks inner

    m_rows = n_rows * hq
    flops = 2 * m_rows * cg * cout_p * kp
    bytes_accessed = (m_rows * cg * in_isz * (cout_p // tn)
                      + kp * cg * cout_p * in_isz
                      + n_rows * l_out * cout_p * out_isz)

    kernel = functools.partial(
        _conv_kernel, k_taps=kp, hq=hq, h_out=h_out, l_out=l_out, pad_lo=pad_lo,
        n_blk=n_blk, apply_lrelu=layer['lrelu'], np_roll=_roll_is_np_convention())

    return pl.pallas_call(
        kernel,
        out_shape=jax.ShapeDtypeStruct((n_rows * l_out, cout_p), out_dt),
        grid=grid,
        in_specs=[
            pl.BlockSpec((n_blk * hq, cg), lambda j, i: (i, 0)),   # streamed row blocks
            pl.BlockSpec((kp, cg, tn), lambda j, i: (0, 0, j)),    # resident per j
            pl.BlockSpec((1, tn), lambda j, i: (0, j)),
        ],
        out_specs=pl.BlockSpec((n_blk * l_out, tn), lambda j, i: (i, j)),
        compiler_params=pltpu.CompilerParams(
            dimension_semantics=("parallel", "parallel"),
            vmem_limit_bytes=vmem_limit),
        cost_estimate=pl.CostEstimate(flops=int(flops), transcendentals=0,
                                      bytes_accessed=int(bytes_accessed)),
    )(x2d, layer['wq'], layer['bq'])


# -----------------------------------------------------------------------------
# Parameters.  weight_norm at init is the identity on the forward pass (g = ||v||),
# so plain deterministically-initialized weights reproduce the module's forward.
# -----------------------------------------------------------------------------
def make_params(key, kernel_size=5, stride=3):
    cfgs = [
        (1, 32, kernel_size, stride, get_padding(5, 1), True),
        (32, 128, kernel_size, stride, get_padding(5, 1), True),
        (128, 512, kernel_size, stride, get_padding(5, 1), True),
        (512, 1024, kernel_size, stride, get_padding(5, 1), True),
        (1024, 1024, kernel_size, 1, 2, True),
        (1024, 1, 3, 1, 1, False),                 # conv_post (no leaky relu)
    ]
    params = []
    for i, (cin, cout, k, s, p, lrelu) in enumerate(cfgs):
        kw, kb = jax.random.split(jax.random.fold_in(key, i))
        scale = 1.0 / np.sqrt(k * cin)
        w = jax.random.normal(kw, (k, cin, cout), jnp.float32) * scale
        bias = jax.random.normal(kb, (cout,), jnp.float32) * scale
        params.append((w, bias, s, p, lrelu))
    return params


def prepare_params(params):
    """Fold stride into the weights' input-channel axis, zero-fill missing taps, pad
    tiny Cout to 128 lanes and cast to the compute dtype ONCE (not per forward)."""
    layers = []
    for (w, bias, s, p, lrelu) in params:
        k, cin, cout = w.shape
        kp = -(-k // s)
        cg = s * cin
        cdt = jnp.bfloat16 if cin >= 8 else jnp.float32   # keep the tiny Cin=1 layer f32
        w_ext = jnp.concatenate(
            [w, jnp.zeros((kp * s - k, cin, cout), w.dtype)], axis=0)
        wq = w_ext.reshape(kp, cg, cout)
        cout_p = cout if cout >= 32 else 128              # lane-dense stores (conv_post)
        bq = bias
        if cout_p != cout:
            wq = jnp.pad(wq, ((0, 0), (0, 0), (0, cout_p - cout)))
            bq = jnp.pad(bias, (0, cout_p - cout))
        layers.append(dict(
            wq=jnp.asarray(wq, cdt), bq=bq.reshape(1, cout_p).astype(jnp.float32),
            k=k, s=s, p=p, kp=kp, cin=cin, cout=cout, cout_p=cout_p, cg=cg,
            cdt=cdt, lrelu=lrelu))
    return layers


def discriminator_p_forward(x, layers, period):
    """x: (b, 1, t) f32.  Returns (flattened_logits, fmap) like the PyTorch module."""
    b, c, t = x.shape
    if t % period != 0:
        n_pad = period - t % period
        x = jnp.pad(x, ((0, 0), (0, 0), (0, n_pad)), mode='reflect')
        t = t + n_pad
    h0 = t // period
    n0 = b * period
    n_rows = _round_up(n0, 8)

    # ---- static geometry chain (python ints, free) ----
    geoms = []
    h_in = h0
    for ly in layers:
        h_out = (h_in + 2 * ly['p'] - ly['k']) // ly['s'] + 1
        # folded input rows this layer needs: tap reads stay in range and the padded
        # element axis holds pad + h_in elements
        need = max(h_out + ly['kp'] - 1, -(-(ly['p'] + h_in) // ly['s']))
        geoms.append(dict(h_in=h_in, h_out=h_out, hq=_round_up(need, _ROW_ALIGN)))
        h_in = h_out
    for li, ly in enumerate(layers):
        g = geoms[li]
        if li + 1 < len(layers):
            nxt_l, nxt_g = layers[li + 1], geoms[li + 1]
            g['pad_lo'] = nxt_l['p']
            g['l_out'] = nxt_l['s'] * nxt_g['hq']
            g['out_dt'] = nxt_l['cdt']          # bf16 activations between layers
        else:
            g['pad_lo'] = 0
            g['l_out'] = _round_up(g['h_out'], _ROW_ALIGN)
            g['out_dt'] = jnp.float32           # final logits in f32

    # ---- layer-1 input: rows = batch*period (channels-last), zero-pad + stride-fold
    x4 = x.reshape(b, c, h0, period)                              # NCHW view
    xr = jnp.transpose(x4, (0, 3, 2, 1)).reshape(n0, h0, c)
    g0, l0 = geoms[0], layers[0]
    len0 = l0['s'] * g0['hq']
    cur = jnp.pad(xr.astype(l0['cdt']),
                  ((0, n_rows - n0), (l0['p'], len0 - l0['p'] - h0), (0, 0)))
    cur = cur.reshape(n_rows * g0['hq'], l0['cg'])

    raw = []
    for li, ly in enumerate(layers):
        out = conv_layer(cur, ly, geoms[li], n_rows)
        raw.append(out)
        if li + 1 < len(layers):
            nxt_l, nxt_g = layers[li + 1], geoms[li + 1]
            assert nxt_l['cg'] == nxt_l['s'] * ly['cout_p']
            # kernel already wrote zero-padded bf16 -> only a free stride-fold reshape
            cur = out.reshape(n_rows * nxt_g['hq'], nxt_l['s'] * ly['cout_p'])

    # ---- fmap back to torch NCHW layout, outside the per-layer hot path ----
    fmap = []
    for ly, g, out in zip(layers, geoms, raw):
        a = out.reshape(n_rows, g['l_out'], ly['cout_p'])
        a = a[:n0, g['pad_lo']:g['pad_lo'] + g['h_out'], :ly['cout']]
        a = jnp.transpose(a.reshape(b, period, g['h_out'], ly['cout']), (0, 3, 2, 1))
        fmap.append(a.astype(jnp.float32))
    out = fmap[-1].reshape(b, -1)           # torch.flatten(x, 1, -1) on (b, 1, H, W)
    return out, fmap


# ------------- pure-JAX reference (same bf16/f32 mixed precision) -------------
def ref_forward(x, params, period):
    b, c, t = x.shape
    if t % period != 0:
        n_pad = period - t % period
        x = jnp.pad(x, ((0, 0), (0, 0), (0, n_pad)), mode='reflect')
        t = t + n_pad
    h = x.reshape(b, c, t // period, period)
    fmap = []
    for (w, bias, s, p, lrelu) in params:
        cin = w.shape[1]
        cdt = jnp.bfloat16 if cin >= 8 else jnp.float32
        w_oihw = jnp.transpose(w, (2, 1, 0))[..., None].astype(cdt)   # (Cout,Cin,K,1)
        h = jax.lax.conv_general_dilated(
            h.astype(cdt), w_oihw, window_strides=(s, 1),
            padding=((p, p), (0, 0)),
            dimension_numbers=('NCHW', 'OIHW', 'NCHW'),
            preferred_element_type=jnp.float32)
        h = h + bias[None, :, None, None]
        if lrelu:
            h = jnp.where(h >= 0, h, LRELU_SLOPE * h)
        fmap.append(h)
    return fmap[-1].reshape(b, -1), fmap


if __name__ == "__main__":
    period = 5
    key = jax.random.PRNGKey(0)
    kx, kparam = jax.random.split(key)

    # small input consistent with the module: (batch=2, channels=1, t=63);
    # t % period != 0 exercises the reflect-pad branch; batch*period=10 exercises
    # row padding and block tiling.
    x = jax.random.normal(kx, (2, 1, 63), jnp.float32)
    params = make_params(kparam)
    layers = prepare_params(params)

    out, fmap = discriminator_p_forward(x, layers, period)
    out = jax.block_until_ready(out)
    fmap = [jax.block_until_ready(f) for f in fmap]

    ref_out, ref_fmap = ref_forward(x, params, period)
    np.testing.assert_allclose(np.asarray(out), np.asarray(ref_out), rtol=1e-2, atol=1e-2)
    for a, r in zip(fmap, ref_fmap):
        np.testing.assert_allclose(np.asarray(a), np.asarray(r), rtol=1e-2, atol=1e-2)

    print("KERNEL_OK")
</pallas_src>

<mosaic_0001>
module attributes {stable_mosaic.version = 11 : i64} {
  func.func @k(%arg0: memref<16x128xf32, #tpu.memory_space<vmem>>, %arg1: memref<16x128xf32, #tpu.memory_space<vmem>>) attributes {dimension_semantics = [], scalar_prefetch = 0 : i64, scratch_operands = 0 : i64, tpu.core_type = #tpu.core_type<tc>} {
    %c0 = arith.constant 0 : index
    %c0_0 = arith.constant 0 : index
    %0 = vector.load %arg0[%c0, %c0_0] : memref<16x128xf32, #tpu.memory_space<vmem>>, vector<16x128xf32>
    %c1_i32 = arith.constant 1 : i32
    %1 = tpu.dynamic_rotate %0 by %c1_i32 dim 0 : vector<16x128xf32>, i32 -> vector<16x128xf32>
    %c0_1 = arith.constant 0 : index
    %c0_2 = arith.constant 0 : index
    %2 = vector.load %arg1[%c0_1, %c0_2] : memref<16x128xf32, #tpu.memory_space<vmem>>, vector<16x128xf32>
    tpu.vector_store %arg1[%c0_1, %c0_2], %1 {strides = array<i32>} : memref<16x128xf32, #tpu.memory_space<vmem>>, vector<16x128xf32>,
    return
  }
}

</mosaic_0001>

<llo_original>
// kernel: tpu_custom_call.1
$region0: #{tpu_custom_call.1}
  #allocation0 [shape = 'u32[]', space=smem, size = 0x4, offset = 0x4, fixed_abs, tag = 'smem constant byte address 0x4 - core index']
  #allocation1 [shape = 'u32[144,128]{1,0:T(1,128)}', space=vmem, size = 0x12000, scoped, tag = 'internal scratch']
  %s0 = inlined_call_operand.hbm [shape: f32[16,128], index: 0, kind: input, shape index: {}]
  %s1 = inlined_call_operand.hbm [shape: f32[16,128], index: 1, kind: output, shape index: {}]
  %s2 = sld [smem:[#allocation0]]
  $region18: #{tpu_custom_call.1} parent=0
    _
  %s4 = ssub.s32 1, %s2
  %s5 = scalar_select 0, %s4, %s2
  $region1: #{tpu_custom_call.1} parent=0
    #allocation2 [shape = 'u8[8192]{0}', space=vmem, size = 0x2000, scoped, tag = 'input window, operand 0, single buffered']
    #allocation3 [shape = 's32[1]{0}', space=sflag, size = 0x4, scoped, tag = 'scoped memory for tpu_custom_call.1']
    #allocation4 [shape = 's32[1]{0}', space=sflag, size = 0x4, scoped, tag = 'scoped memory for tpu_custom_call.1']
    #allocation5 [shape = 'u8[8192]{0}', space=vmem, size = 0x2000, scoped, tag = 'output window, operand 0, single buffered']
    %6 = vsyncpa [#allocation3], 0
    %7 = vsyncpa [#allocation4], 0
    // Predicated region
    $region2: #{tpu_custom_call.1} parent=1 // pred_check
      _
    $region3: #{tpu_custom_call.1} parent=1 // pred_check_branch
      %9 = sbr.rel (0) target = $region5
    $region4: #{tpu_custom_call.1} parent=1 // pred_region
      %s11 = ssub.s32 256, 256
      %12 = vsyncadd [#allocation3], %s11
      %s13 = sshll.u32 [#allocation2], 4
      %s14 = int_to_ptr.vmem [resolvable:$true] %s13
      %19 = dma.hbm_to_vmem [thread:$0]  %s0, 256, %s14, [#allocation3], 128, 128, 8
    $region5: #{tpu_custom_call.1} parent=1 // pred_fallthru
      _
    // Predicated region
    $region6: #{tpu_custom_call.1} parent=1 // pred_check
      _
    $region7: #{tpu_custom_call.1} parent=1 // pred_check_branch
      %21 = sbr.rel (0) target = $region9
    $region8: #{tpu_custom_call.1} parent=1 // pred_region
      %22 = dma.done [#allocation3], 256
    $region9: #{tpu_custom_call.1} parent=1 // pred_fallthru
      _
    %v23 = vld [vmem:[#allocation2] sm:$0xff]
    %v24 = vld [vmem:[#allocation2 + $0x8] sm:$0xff]
    %v25 = vrot.slane %v23, 7
    %v26 = vrot.slane %v24, 7
    %v27 = vlaneseq
    %v28 = vshrl.u32 %v27, 7
    %vm29 = vcmp.lt.s32.totalorder %v28, 1
    %v30 = vsel %vm29, %v25, %v26
    %v31 = vsel %vm29, %v26, %v25
    %32 = vst [vmem:[#allocation5] sm:$0xff] %v31
    %33 = vst [vmem:[#allocation5 + $0x8] sm:$0xff] %v30
    // Predicated region
    $region10: #{tpu_custom_call.1} parent=1 // pred_check
      _
    $region11: #{tpu_custom_call.1} parent=1 // pred_check_branch
      %35 = sbr.rel (0) target = $region13
    $region12: #{tpu_custom_call.1} parent=1 // pred_region
      %s37 = ssub.s32 256, 256
      %38 = vsyncadd [#allocation4], %s37
      %s39 = sshll.u32 [#allocation5], 4
      %s40 = int_to_ptr.vmem [resolvable:$true] %s39
      %45 = dma.vmem_to_hbm [thread:$0]  %s40, 256, %s1, [#allocation4], 128, 128, 8
    $region13: #{tpu_custom_call.1} parent=1 // pred_fallthru
      _
    // Predicated region
    $region14: #{tpu_custom_call.1} parent=1 // pred_check
      _
    $region15: #{tpu_custom_call.1} parent=1 // pred_check_branch
      %47 = sbr.rel (0) target = $region17
    $region16: #{tpu_custom_call.1} parent=1 // pred_region
      %48 = dma.done [#allocation4], 256
    $region17: #{tpu_custom_call.1} parent=1 // pred_fallthru
      _
    %49 = vsyncpa [#allocation3], 1
    %50 = vsyncpa [#allocation4], 1

</llo_original>
